<compile_context>
chip_gen: v6e
topology: v6e:2x2x1
jax: 0.10.0
libtpu: 0.0.40
codegen_flags: <defaults>
</compile_context>

<pallas_src>
import functools
import math

import jax
import jax.numpy as jnp
from jax.experimental import pallas as pl
from jax.experimental.pallas import tpu as pltpu


def _dot_attention_kernel(h_ref, w_ref, o_ref, acc_ref, *, scale):
    # h_ref: (BB, S, tH) block; w_ref: (1, tH); o_ref: (BB, S); acc_ref: (BB, S) f32 scratch.
    k = pl.program_id(1)

    @pl.when(k == 0)
    def _init():
        acc_ref[...] = jnp.zeros_like(acc_ref)

    h = h_ref[...].astype(jnp.float32)          # (BB, S, tH)
    w = w_ref[...].astype(jnp.float32)          # (1, tH)
    # VPU broadcast-multiply + cross-lane (XLU) reduction over the H chunk. Avoids an N=1 MXU
    # matvec and produces the partial scores directly in the lane-dense (BB, S) layout (lanes=S)
    # that the softmax and the store below want.
    acc_ref[...] += jnp.sum(h * w, axis=-1)     # (1, tH) broadcasts over (BB, S, tH)

    @pl.when(k == pl.num_programs(1) - 1)
    def _finalize():
        scores = acc_ref[...] * scale                              # (BB, S), lane-dense
        m = jnp.max(scores, axis=-1, keepdims=True)                # (BB, 1)
        e = jnp.exp(scores - m)                                    # EUP, lane-dense
        denom = jnp.sum(e, axis=-1, keepdims=True)                 # (BB, 1)
        r = pl.reciprocal(denom, approx=True)                      # EUP slot (cheap)
        r = r * (2.0 - denom * r)                                  # one Newton step -> full f32 accuracy
        o_ref[...] = (e * r).astype(o_ref.dtype)


def _vmem_capacity_bytes(default=64 * 1024 * 1024):
    # v5e/v6e: 128 MiB physical VMEM, v7x: 64 MiB. Fall back to the conservative (v7x) value.
    try:
        cap = getattr(pltpu.get_tpu_info(), "vmem_capacity_bytes", None)
        if cap:
            return int(cap)
    except Exception:
        pass
    return default


def _choose_blocks(B, S, H, itemsize, budget_bytes):
    """Pick (BB, tH): batch rows per grid step and the H tile, keeping one hidden input block
    within `budget_bytes` and respecting TPU block constraints (block last dim must be a
    multiple of 128 or the full dim; output block's second-to-last dim a multiple of 8 or B)."""
    # H tile: prefer one full-H pass; otherwise the largest 128-multiple divisor of H that fits
    # an (8, S, tH) block in the budget (exact divisor => no garbage-padded reduction chunks).
    tH = H
    if 8 * S * H * itemsize > budget_bytes and H > 128:
        th = min(H, budget_bytes // (8 * S * itemsize)) // 128 * 128
        while th >= 128 and H % th != 0:
            th -= 128
        if th >= 128:
            tH = th
        # else: no suitable divisor; keep full H and rely on the raised vmem limit.
    # Batch rows per step: as many as fit the budget, multiple of 8 (or the whole batch).
    rows = max(1, budget_bytes // (S * tH * itemsize))
    if rows >= B or B <= 8:
        BB = B
    else:
        BB = max(8, min(rows, B) // 8 * 8)
    # Keep >= 2 grid steps along the (parallel) batch axis when possible so both v7x
    # TensorCores get work (no effect on single-TC v5e/v6e).
    if BB == B and B >= 16:
        BB = max(8, pl.cdiv(B, 2) // 8 * 8)
    return BB, tH


def dot_attention(hidden, weight_1h, *, block_batch=None, block_hidden=None):
    """hidden: (B, S, H); weight_1h: (1, H) == torch nn.Linear(H, 1, bias=False).weight layout.
    Returns softmax over S of (hidden @ weight_1h.T / sqrt(H)), shape (B, S)."""
    B, S, H = hidden.shape
    assert weight_1h.shape == (1, H)

    vmem_cap = _vmem_capacity_bytes()
    # Per hidden-input-block budget; blocks are double-buffered by the pipeline and we leave
    # headroom for the (small) weight / output / scratch buffers.
    budget = max(2 * 1024 * 1024, vmem_cap // 8)
    BB, tH = _choose_blocks(B, S, H, hidden.dtype.itemsize, budget)
    if block_batch is not None:
        BB = block_batch
    if block_hidden is not None:
        tH = block_hidden

    grid = (pl.cdiv(B, BB), pl.cdiv(H, tH))
    kernel = functools.partial(_dot_attention_kernel, scale=1.0 / math.sqrt(H))

    return pl.pallas_call(
        kernel,
        out_shape=jax.ShapeDtypeStruct((B, S), hidden.dtype),
        grid=grid,
        in_specs=[
            pl.BlockSpec((BB, S, tH), lambda b, k: (b, 0, k)),   # BB batch rows x tH hidden cols
            pl.BlockSpec((1, tH), lambda b, k: (0, k)),          # weight chunk (resident over b)
        ],
        out_specs=pl.BlockSpec((BB, S), lambda b, k: (b, 0)),    # revisited across k (accumulator)
        scratch_shapes=[pltpu.VMEM((BB, S), jnp.float32)],
        compiler_params=pltpu.CompilerParams(
            dimension_semantics=("parallel", "arbitrary"),
            vmem_limit_bytes=int(vmem_cap // 2),
        ),
    )(hidden, weight_1h)


def dot_attention_ref(hidden, weight_1h):
    scores = (hidden @ weight_1h.T)[..., 0] / math.sqrt(hidden.shape[-1])
    return jax.nn.softmax(scores, axis=-1)


if __name__ == "__main__":
    B, S, H = 2, 8, 32
    key = jax.random.PRNGKey(0)
    k_h, k_w = jax.random.split(key)
    hidden = jax.random.normal(k_h, (B, S, H), dtype=jnp.float32)
    # nn.Linear(H, 1, bias=False) weight, uniform_(-stdv, stdv) with stdv = 1/sqrt(H); torch layout (1, H).
    stdv = 1.0 / math.sqrt(H)
    weight_1h = jax.random.uniform(k_w, (1, H), minval=-stdv, maxval=stdv, dtype=jnp.float32)

    out = dot_attention(hidden, weight_1h)
    jax.block_until_ready(out)

    ref = dot_attention_ref(hidden, weight_1h)
    assert out.shape == (B, S)
    # approx reciprocal + one Newton step keeps the softmax at essentially full f32 accuracy.
    assert jnp.allclose(out, ref, atol=1e-4, rtol=1e-4), "mismatch vs reference"
    print("KERNEL_OK")
</pallas_src>

<mosaic_0001>
module attributes {stable_mosaic.version = 11 : i64} {
  func.func @_dot_attention_kernel(%arg0: i32, %arg1: i32, %arg2: memref<2x8x32xf32, #tpu.memory_space<vmem>>, %arg3: memref<1x32xf32, #tpu.memory_space<vmem>>, %arg4: memref<2x8xf32, #tpu.memory_space<vmem>>, %arg5: memref<2x8xf32, #tpu.memory_space<vmem>>) attributes {dimension_semantics = [#tpu.dimension_semantics<parallel>, #tpu.dimension_semantics<arbitrary>], iteration_bounds = array<i64: 1, 1>, scalar_prefetch = 0 : i64, scratch_operands = 1 : i64, tpu.core_type = #tpu.core_type<tc>, window_params = [{transform_indices = @transform_0, window_bounds = array<i64: 2, 8, 32>}, {transform_indices = @transform_1, window_bounds = array<i64: 1, 32>}, {transform_indices = @transform_2, window_bounds = array<i64: 2, 8>}]} {
    %c0_i32 = arith.constant 0 : i32
    %0 = arith.cmpi eq, %arg1, %c0_i32 : i32
    %1 = arith.extui %0 : i1 to i32
    %c0_i32_0 = arith.constant 0 : i32
    %2 = arith.cmpi ne, %1, %c0_i32_0 : i32
    scf.if %2 {
      %cst_11 = arith.constant 0.000000e+00 : f32
      %15 = vector.broadcast %cst_11 : f32 to vector<2x8xf32>
      %c0_12 = arith.constant 0 : index
      %c0_13 = arith.constant 0 : index
      %16 = vector.load %arg5[%c0_12, %c0_13] : memref<2x8xf32, #tpu.memory_space<vmem>>, vector<2x8xf32>
      tpu.vector_store %arg5[%c0_12, %c0_13], %15 {strides = array<i32>} : memref<2x8xf32, #tpu.memory_space<vmem>>, vector<2x8xf32>,
    } else {
    }
    %c0 = arith.constant 0 : index
    %c0_1 = arith.constant 0 : index
    %c0_2 = arith.constant 0 : index
    %3 = vector.load %arg2[%c0, %c0_1, %c0_2] : memref<2x8x32xf32, #tpu.memory_space<vmem>>, vector<2x8x32xf32>
    %c0_3 = arith.constant 0 : index
    %c0_4 = arith.constant 0 : index
    %4 = vector.load %arg3[%c0_3, %c0_4] : memref<1x32xf32, #tpu.memory_space<vmem>>, vector<1x32xf32>
    %c0_5 = arith.constant 0 : index
    %c0_6 = arith.constant 0 : index
    %5 = vector.load %arg5[%c0_5, %c0_6] : memref<2x8xf32, #tpu.memory_space<vmem>>, vector<2x8xf32>
    %6 = vector.shape_cast %4 : vector<1x32xf32> to vector<1x1x32xf32>
    %7 = vector.broadcast %6 : vector<1x1x32xf32> to vector<2x8x32xf32>
    %8 = arith.mulf %3, %7 : vector<2x8x32xf32>
    %cst = arith.constant dense<0.000000e+00> : vector<2x8xf32>
    %9 = vector.multi_reduction <add>, %8, %cst [2] : vector<2x8x32xf32> to vector<2x8xf32>
    %10 = arith.addf %5, %9 : vector<2x8xf32>
    %c0_7 = arith.constant 0 : index
    %c0_8 = arith.constant 0 : index
    %11 = vector.load %arg5[%c0_7, %c0_8] : memref<2x8xf32, #tpu.memory_space<vmem>>, vector<2x8xf32>
    tpu.vector_store %arg5[%c0_7, %c0_8], %10 {strides = array<i32>} : memref<2x8xf32, #tpu.memory_space<vmem>>, vector<2x8xf32>,
    %c0_i32_9 = arith.constant 0 : i32
    %12 = arith.cmpi eq, %arg1, %c0_i32_9 : i32
    %13 = arith.extui %12 : i1 to i32
    %c0_i32_10 = arith.constant 0 : i32
    %14 = arith.cmpi ne, %13, %c0_i32_10 : i32
    scf.if %14 {
      %c0_11 = arith.constant 0 : index
      %c0_12 = arith.constant 0 : index
      %15 = vector.load %arg5[%c0_11, %c0_12] : memref<2x8xf32, #tpu.memory_space<vmem>>, vector<2x8xf32>
      %cst_13 = arith.constant 0.176776692 : f32
      %16 = vector.broadcast %cst_13 : f32 to vector<2x8xf32>
      %17 = arith.mulf %15, %16 : vector<2x8xf32>
      %cst_14 = arith.constant dense<0xFF800000> : vector<2xf32>
      %18 = vector.multi_reduction <maximumf>, %17, %cst_14 [1] : vector<2x8xf32> to vector<2xf32>
      %19 = vector.shape_cast %18 : vector<2xf32> to vector<2x1xf32>
      %20 = vector.broadcast %19 : vector<2x1xf32> to vector<2x8xf32>
      %21 = arith.subf %17, %20 : vector<2x8xf32>
      %22 = math.exp %21 : vector<2x8xf32>
      %cst_15 = arith.constant dense<0.000000e+00> : vector<2xf32>
      %23 = vector.multi_reduction <add>, %22, %cst_15 [1] : vector<2x8xf32> to vector<2xf32>
      %24 = vector.shape_cast %23 : vector<2xf32> to vector<2x1xf32>
      %25 = tpu.reciprocal %24 {approx = true} : vector<2x1xf32> -> vector<2x1xf32>
      %26 = arith.mulf %24, %25 : vector<2x1xf32>
      %cst_16 = arith.constant 2.000000e+00 : f32
      %27 = vector.broadcast %cst_16 : f32 to vector<2x1xf32>
      %28 = arith.subf %27, %26 : vector<2x1xf32>
      %29 = arith.mulf %25, %28 : vector<2x1xf32>
      %30 = vector.broadcast %29 : vector<2x1xf32> to vector<2x8xf32>
      %31 = arith.mulf %22, %30 : vector<2x8xf32>
      %c0_17 = arith.constant 0 : index
      %c0_18 = arith.constant 0 : index
      %32 = vector.load %arg4[%c0_17, %c0_18] : memref<2x8xf32, #tpu.memory_space<vmem>>, vector<2x8xf32>
      tpu.vector_store %arg4[%c0_17, %c0_18], %31 {strides = array<i32>} : memref<2x8xf32, #tpu.memory_space<vmem>>, vector<2x8xf32>,
    } else {
    }
    return
  }
  func.func @transform_0(%arg0: i32, %arg1: i32) -> (i32, i32, i32) {
    %c0_i32 = arith.constant 0 : i32
    %c0_i32_0 = arith.constant 0 : i32
    return %arg0, %c0_i32, %arg1 : i32, i32, i32
  }
  func.func @transform_1(%arg0: i32, %arg1: i32) -> (i32, i32) {
    %c0_i32 = arith.constant 0 : i32
    %c0_i32_0 = arith.constant 0 : i32
    return %c0_i32, %arg1 : i32, i32
  }
  func.func @transform_2(%arg0: i32, %arg1: i32) -> (i32, i32) {
    %c0_i32 = arith.constant 0 : i32
    %c0_i32_0 = arith.constant 0 : i32
    return %arg0, %c0_i32 : i32, i32
  }
}

</mosaic_0001>

<llo_original>
// kernel: tpu_custom_call.1
$region0: #{tpu_custom_call.1}
  #allocation0 [shape = 'u32[]', space=smem, size = 0x4, offset = 0x4, fixed_abs, tag = 'smem constant byte address 0x4 - core index']
  #allocation1 [shape = 'u32[144,128]{1,0:T(1,128)}', space=vmem, size = 0x12000, scoped, tag = 'internal scratch']
  #allocation2 [shape = 'f32[2,8]{1,0:T(2,128)}', space=vmem, size = 0x400, scoped, tag = 'scratch operand']
  %s0 = inlined_call_operand.hbm [shape: f32[2,8,32], index: 0, kind: input, shape index: {}]
  %s1 = inlined_call_operand.vmem [shape: f32[1,32], index: 1, kind: input, shape index: {}]
  %s2 = inlined_call_operand.hbm [shape: f32[2,8], index: 2, kind: output, shape index: {}]
  %s3 = sld [smem:[#allocation0]]
  $region30: #{tpu_custom_call.1} parent=0
    _
  %s5 = ssub.s32 1, %s3
  %s6 = scalar_select 0, %s5, %s3
  $region1: #{tpu_custom_call.1} parent=0
    #allocation3 [shape = 'u8[8192]{0}', space=vmem, size = 0x2000, scoped, tag = 'input window, operand 0, single buffered']
    #allocation4 [shape = 's32[1]{0}', space=sflag, size = 0x4, scoped, tag = 'scoped memory for tpu_custom_call.1']
    #allocation5 [shape = 's32[1]{0}', space=sflag, size = 0x4, scoped, tag = 'scoped memory for tpu_custom_call.1']
    #allocation6 [shape = 'u8[1024]{0}', space=vmem, size = 0x400, scoped, tag = 'output window, operand 0, single buffered']
    %7 = vsyncpa [#allocation4], 0
    %8 = vsyncpa [#allocation5], 0
    // Predicated region
    $region2: #{tpu_custom_call.1} parent=1 // pred_check
      _
    $region3: #{tpu_custom_call.1} parent=1 // pred_check_branch
      %10 = sbr.rel (0) target = $region5
    $region4: #{tpu_custom_call.1} parent=1 // pred_region
      %s12 = ssub.s32 256, 256
      %13 = vsyncadd [#allocation4], %s12
      %s14 = sshll.u32 [#allocation3], 4
      %s15 = int_to_ptr.vmem [resolvable:$true] %s14
      %20 = dma.hbm_to_vmem [thread:$0]  %s0, 256, %s15, [#allocation4], 128, 128, 8
    $region5: #{tpu_custom_call.1} parent=1 // pred_fallthru
      _
    // Predicated region
    $region6: #{tpu_custom_call.1} parent=1 // pred_check
      _
    $region7: #{tpu_custom_call.1} parent=1 // pred_check_branch
      %22 = sbr.rel (0) target = $region9
    $region8: #{tpu_custom_call.1} parent=1 // pred_region
      _
    $region9: #{tpu_custom_call.1} parent=1 // pred_fallthru
      _
    // Predicated region
    $region10: #{tpu_custom_call.1} parent=1 // pred_check
      _
    $region11: #{tpu_custom_call.1} parent=1 // pred_check_branch
      %24 = sbr.rel (0) target = $region13
    $region12: #{tpu_custom_call.1} parent=1 // pred_region
      %25 = dma.done [#allocation4], 256
    $region13: #{tpu_custom_call.1} parent=1 // pred_fallthru
      _
    %p26 = scmp.eq.s32.totalorder 0, 0
    // Predicated region
    $region14: #{tpu_custom_call.1} parent=1 // pred_check
      %p27 = pneg %p26
    $region15: #{tpu_custom_call.1} parent=1 // pred_check_branch
      %29 = sbr.rel (%p27) target = $region17
    $region16: #{tpu_custom_call.1} parent=1 // pred_region
      %vm30 = vcmask 58368
      %31 = vst.msk [vmem:[#allocation2] sm:$0x3] %vm30, 0.0
    $region17: #{tpu_custom_call.1} parent=1 // pred_fallthru
      _
    %v32 = vld [vmem:[#allocation3] sm:$0xff]
    %v33 = vld [vmem:[#allocation3 + $0x8] sm:$0xff]
    %v34 = vld [vmem:[%s1] sm:$0x1]
    %v35 = vld [vmem:[#allocation2] sm:$0x3]
    %v37 = vlaneseq
    %v38 = vshrl.u32 %v37, 7
    %v39 = vsub.s32 0, %v38
    %v40 = vrot.slane %v34, %v39
    %v42 = vmul.f32 %v32, %v40
    %v43 = vmul.f32 %v33, %v40
    %vm44 = vcmask 261120
    %v45 = vsel %vm44, %v42, 0.0
    %46 = vadd.xlane.f32.xlu0 %v45
    %v47 = vpop.xlane.xlu0 %46
    %v48 = vsel %vm44, %v43, 0.0
    %49 = vadd.xlane.f32.xlu0 %v48
    %v50 = vpop.xlane.xlu0 %49
    %v53 = vlaneseq
    %v54 = vand.u32 %v53, 127
    %v55 = vlaneseq
    %v56 = vshrl.u32 %v55, 7
    %v57 = vsub.s32 %v54, %v56
    %v58 = vrot.slane %v47, %v57
    %v59 = vlaneseq
    %v60 = vshrl.u32 %v59, 7
    %v61 = vsub.s32 %v54, %v60
    %v62 = vrot.slane %v50, %v61
    %vm63 = vcmask 1041409
    %v64 = vsel %vm63, %v62, %v58
    %v66 = vadd.f32 %v35, %v64
    %vm67 = vcmask 58368
    %68 = vst.msk [vmem:[#allocation2] sm:$0x3] %vm67, %v66
    // Predicated region
    $region18: #{tpu_custom_call.1} parent=1 // pred_check
      %p69 = pneg %p26
    $region19: #{tpu_custom_call.1} parent=1 // pred_check_branch
      %71 = sbr.rel (%p69) target = $region21
    $region20: #{tpu_custom_call.1} parent=1 // pred_region
      %v72 = vld [vmem:[#allocation2] sm:$0x3]
      %v73 = vmul.f32 %v72, 0.17677669
      %v74 = vsel %vm67, %v73, -inf
      %75 = vmax.xlane.f32.xlu0 %v74
      %v76 = vpop.xlane.xlu0 %75
      %v77 = vsub.f32 %v73, %v76
      %v78 = vmul.f32 %v77, 1.442695
      %v79 = vpow.pop %v78
      %v80 = vsel %vm67, %v79, 0.0
      %81 = vadd.xlane.f32.xlu0 %v80
      %v82 = vpop.xlane.xlu0 %81
      %v83 = vrcp.pop %v82
      %v84 = vmul.f32 %v82, %v83
      %v85 = vsub.f32 2.0, %v84
      %v86 = vmul.f32 %v83, %v85
      %v87 = vmul.f32 %v79, %v86
      %88 = vst.msk [vmem:[#allocation6] sm:$0x3] %vm67, %v87
    $region21: #{tpu_custom_call.1} parent=1 // pred_fallthru
      _
    // Predicated region
    $region22: #{tpu_custom_call.1} parent=1 // pred_check
      _
    $region23: #{tpu_custom_call.1} parent=1 // pred_check_branch
      %90 = sbr.rel (0) target = $region25
    $region24: #{tpu_custom_call.1} parent=1 // pred_region
      %s92 = ssub.s32 32, 32
      %93 = vsyncadd [#allocation5], %s92
      %s95 = sshll.u32 [#allocation6], 4
      %s96 = int_to_ptr.vmem [resolvable:$true] %s95
      %98 = dma.vmem_to_hbm [thread:$0]  %s96, 32, %s2, [#allocation5]
    $region25: #{tpu_custom_call.1} parent=1 // pred_fallthru
      _
    // Predicated region
    $region26: #{tpu_custom_call.1} parent=1 // pred_check
      _
    $region27: #{tpu_custom_call.1} parent=1 // pred_check_branch
      %100 = sbr.rel (0) target = $region29
    $region28: #{tpu_custom_call.1} parent=1 // pred_region
      %101 = dma.done [#allocation5], 32
    $region29: #{tpu_custom_call.1} parent=1 // pred_fallthru
      _
    %102 = vsyncpa [#allocation4], 1
    %103 = vsyncpa [#allocation5], 1

</llo_original>
